<compile_context>
chip_gen: v7x
topology: tpu7x:2x2x1
jax: 0.10.0
libtpu: 0.0.40
codegen_flags: <defaults>
</compile_context>

<pallas_src>
import functools

import jax
import jax.numpy as jnp
from jax.experimental import pallas as pl
from jax.experimental.pallas import tpu as pltpu

LANE = 128     # TPU vreg lane width (last dim)
SUBLANE = 8    # TPU vreg sublane width (second-to-last dim)


def _round_up(n, m):
    return ((n + m - 1) // m) * m


def dqn_mlp_kernel(x_ref, w1_ref, b1_ref, w2_ref, b2_ref, w3_ref, b3_ref, o_ref):
    """One batch tile of the 3-layer MLP. Weight/bias refs are VMEM-resident."""
    w_dtype = w1_ref.dtype
    x = x_ref[...].astype(w_dtype)

    # fc1 + ReLU (f32 MXU accumulation; bias add + ReLU in f32 on the VPU)
    h1 = jnp.dot(x, w1_ref[...], preferred_element_type=jnp.float32) + b1_ref[...]
    h1 = jnp.maximum(h1, 0.0)

    # fc2 + ReLU
    h2 = jnp.dot(h1.astype(w_dtype), w2_ref[...],
                 preferred_element_type=jnp.float32) + b2_ref[...]
    h2 = jnp.maximum(h2, 0.0)

    # fc3 (no activation)
    out = jnp.dot(h2.astype(w_dtype), w3_ref[...],
                  preferred_element_type=jnp.float32) + b3_ref[...]
    o_ref[...] = out.astype(o_ref.dtype)


@functools.partial(jax.jit, static_argnames=("action_dim", "tile_b"))
def dqn_forward(x, params, *, action_dim, tile_b=2048):
    """Forward pass.

    x: [B, state_dim] (f32 or bf16). params: dict from init_params (weights
    already lane-padded). Returns [B, action_dim] in x.dtype.
    """
    w1, b1, w2, b2, w3, b3 = (params["w1"], params["b1"], params["w2"],
                              params["b2"], params["w3"], params["b3"])
    B, S = x.shape
    assert w1.shape[0] == S, "state_dim mismatch between x and params"
    H1_p = w1.shape[1]
    H2_p = w2.shape[1]
    A_p = w3.shape[1]

    # Batch tile: as large as possible (per-grid-step overhead ~0.35 us), but
    # capped so the grid keeps >= 2 steps so v7x can shard the parallel batch
    # axis across both TensorCores. Must be a multiple of 8 (sublanes).
    tb = min(_round_up(tile_b, SUBLANE), _round_up(pl.cdiv(B, 2), SUBLANE))
    tb = max(tb, SUBLANE)
    grid = (pl.cdiv(B, tb),)   # ragged last block handled by Pallas (no jnp.pad)

    def resident(shape):
        # Constant index_map -> same block every grid step -> stays in VMEM.
        return pl.BlockSpec(shape, lambda i: (0, 0))

    out_p = pl.pallas_call(
        dqn_mlp_kernel,
        out_shape=jax.ShapeDtypeStruct((B, A_p), x.dtype),
        grid=grid,
        in_specs=[
            # x: tiled over batch; last dim = full array dim, so no lane pad.
            pl.BlockSpec((tb, S), lambda i: (i, 0)),
            resident((S, H1_p)), resident((1, H1_p)),    # fc1
            resident((H1_p, H2_p)), resident((1, H2_p)), # fc2
            resident((H2_p, A_p)), resident((1, A_p)),   # fc3
        ],
        out_specs=pl.BlockSpec((tb, A_p), lambda i: (i, 0)),
        compiler_params=pltpu.CompilerParams(
            dimension_semantics=("parallel",),   # megacore-shardable on v7x
            vmem_limit_bytes=32 * 1024 * 1024,   # headroom beyond v5e's 16 MiB default
        ),
    )(x, w1, b1, w2, b2, w3, b3)

    return out_p[:, :action_dim]


def init_params(key, state_dim, action_dim, hidden_dim=256,
                param_dtype=jnp.float32):
    """Mirrors nn.Linear default init: U(-1/sqrt(fan_in), 1/sqrt(fan_in)).

    Weights are stored pre-transposed as [in, out] so the kernel does x @ W + b,
    and are zero-padded ONCE here to lane multiples (no per-call padding).
    param_dtype=jnp.bfloat16 stores weights at the MXU-native rate; biases stay
    f32 and accumulation is always f32.
    """
    keys = jax.random.split(key, 6)
    H_p = _round_up(hidden_dim, LANE)
    A_p = _round_up(action_dim, LANE)

    def linear(kw, kb, fan_in, fan_out, rows_p, cols_p):
        bound = float(fan_in) ** -0.5
        w = jax.random.uniform(kw, (fan_in, fan_out), jnp.float32, -bound, bound)
        b = jax.random.uniform(kb, (1, fan_out), jnp.float32, -bound, bound)
        # Zero-pad once at init; padding is mathematically inert.
        w = jnp.pad(w, ((0, rows_p - fan_in), (0, cols_p - fan_out))).astype(param_dtype)
        b = jnp.pad(b, ((0, 0), (0, cols_p - fan_out)))          # bias stays f32
        return w, b

    # w1 keeps its true row count (= state_dim) so x needs no lane padding.
    w1, b1 = linear(keys[0], keys[1], state_dim, hidden_dim, state_dim, H_p)
    w2, b2 = linear(keys[2], keys[3], hidden_dim, hidden_dim, H_p, H_p)
    w3, b3 = linear(keys[4], keys[5], hidden_dim, action_dim, H_p, A_p)
    return {"w1": w1, "b1": b1, "w2": w2, "b2": b2, "w3": w3, "b3": b3}


def reference_forward(x, params, action_dim):
    """Pure-JAX reference using the (inertly padded) params."""
    w_dtype = params["w1"].dtype
    h1 = jnp.maximum(
        jnp.dot(x.astype(w_dtype), params["w1"],
                preferred_element_type=jnp.float32) + params["b1"], 0.0)
    h2 = jnp.maximum(
        jnp.dot(h1.astype(w_dtype), params["w2"],
                preferred_element_type=jnp.float32) + params["b2"], 0.0)
    out = jnp.dot(h2.astype(w_dtype), params["w3"],
                  preferred_element_type=jnp.float32) + params["b3"]
    return out[:, :action_dim]


if __name__ == "__main__":
    # Small shapes consistent with the module (hidden_dim=256 default).
    # batch=200 exercises a 2-step grid (tile capped at ceil(B/2)=104 rows) and
    # the ragged, unpadded last batch block.
    batch, state_dim, action_dim, hidden_dim = 200, 16, 4, 256

    key = jax.random.PRNGKey(0)
    k_x, k_p = jax.random.split(key)
    x = jax.random.normal(k_x, (batch, state_dim), jnp.float32)

    # --- f32 weights: matches PyTorch numerics ---
    params = init_params(k_p, state_dim, action_dim, hidden_dim)
    out = jax.block_until_ready(dqn_forward(x, params, action_dim=action_dim))
    assert out.shape == (batch, action_dim)
    ref = reference_forward(x, params, action_dim)
    assert jnp.allclose(out, ref, atol=1e-4, rtol=1e-4), float(
        jnp.max(jnp.abs(out - ref)))

    # --- bf16 weights + bf16 activations: MXU-native rate, half the bandwidth ---
    params_bf16 = init_params(k_p, state_dim, action_dim, hidden_dim,
                              param_dtype=jnp.bfloat16)
    x_bf16 = x.astype(jnp.bfloat16)
    out_bf16 = jax.block_until_ready(
        dqn_forward(x_bf16, params_bf16, action_dim=action_dim))
    assert out_bf16.shape == (batch, action_dim)
    ref_bf16 = reference_forward(x_bf16, params_bf16, action_dim)
    assert jnp.allclose(out_bf16.astype(jnp.float32),
                        ref_bf16.astype(jnp.float32),
                        atol=5e-2, rtol=5e-2), float(
        jnp.max(jnp.abs(out_bf16.astype(jnp.float32) -
                        ref_bf16.astype(jnp.float32))))

    print("KERNEL_OK")
</pallas_src>

<mosaic_0001>
module attributes {stable_mosaic.version = 11 : i64} {
  func.func @dqn_mlp_kernel(%arg0: i32, %arg1: memref<104x16xf32, #tpu.memory_space<vmem>>, %arg2: memref<16x256xf32, #tpu.memory_space<vmem>>, %arg3: memref<1x256xf32, #tpu.memory_space<vmem>>, %arg4: memref<256x256xf32, #tpu.memory_space<vmem>>, %arg5: memref<1x256xf32, #tpu.memory_space<vmem>>, %arg6: memref<256x128xf32, #tpu.memory_space<vmem>>, %arg7: memref<1x128xf32, #tpu.memory_space<vmem>>, %arg8: memref<104x128xf32, #tpu.memory_space<vmem>>) attributes {dimension_semantics = [#tpu.dimension_semantics<parallel>], iteration_bounds = array<i64: 2>, scalar_prefetch = 0 : i64, scratch_operands = 0 : i64, tpu.core_type = #tpu.core_type<tc>, window_params = [{transform_indices = @transform_0, window_bounds = array<i64: 104, 16>}, {pipeline_mode = #tpu.pipeline_mode<synchronous>, transform_indices = @transform_1, window_bounds = array<i64: 16, 256>}, {pipeline_mode = #tpu.pipeline_mode<synchronous>, transform_indices = @transform_2, window_bounds = array<i64: 1, 256>}, {pipeline_mode = #tpu.pipeline_mode<synchronous>, transform_indices = @transform_3, window_bounds = array<i64: 256, 256>}, {pipeline_mode = #tpu.pipeline_mode<synchronous>, transform_indices = @transform_4, window_bounds = array<i64: 1, 256>}, {pipeline_mode = #tpu.pipeline_mode<synchronous>, transform_indices = @transform_5, window_bounds = array<i64: 256, 128>}, {pipeline_mode = #tpu.pipeline_mode<synchronous>, transform_indices = @transform_6, window_bounds = array<i64: 1, 128>}, {transform_indices = @transform_7, window_bounds = array<i64: 104, 128>}]} {
    %c0 = arith.constant 0 : index
    %c0_0 = arith.constant 0 : index
    %0 = vector.load %arg1[%c0, %c0_0] : memref<104x16xf32, #tpu.memory_space<vmem>>, vector<104x16xf32>
    %c0_1 = arith.constant 0 : index
    %c0_2 = arith.constant 0 : index
    %1 = vector.load %arg2[%c0_1, %c0_2] : memref<16x256xf32, #tpu.memory_space<vmem>>, vector<16x256xf32>
    %cst = arith.constant dense<0.000000e+00> : vector<104x256xf32>
    %2 = tpu.matmul %0, %1, %cst {dimension_numbers = #tpu.dot_dimension_numbers<[1], [0], [0], [1], [0, 0, 1, 1], [], []>} : vector<104x16xf32>, vector<16x256xf32>, vector<104x256xf32> -> vector<104x256xf32>
    %c0_3 = arith.constant 0 : index
    %c0_4 = arith.constant 0 : index
    %3 = vector.load %arg3[%c0_3, %c0_4] : memref<1x256xf32, #tpu.memory_space<vmem>>, vector<1x256xf32>
    %4 = vector.broadcast %3 : vector<1x256xf32> to vector<104x256xf32>
    %5 = arith.addf %2, %4 : vector<104x256xf32>
    %cst_5 = arith.constant 0.000000e+00 : f32
    %6 = vector.broadcast %cst_5 : f32 to vector<104x256xf32>
    %7 = arith.maximumf %5, %6 : vector<104x256xf32>
    %c0_6 = arith.constant 0 : index
    %c0_7 = arith.constant 0 : index
    %8 = vector.load %arg4[%c0_6, %c0_7] : memref<256x256xf32, #tpu.memory_space<vmem>>, vector<256x256xf32>
    %cst_8 = arith.constant dense<0.000000e+00> : vector<104x256xf32>
    %9 = tpu.matmul %7, %8, %cst_8 {dimension_numbers = #tpu.dot_dimension_numbers<[1], [0], [0], [1], [0, 0, 1, 1], [], []>} : vector<104x256xf32>, vector<256x256xf32>, vector<104x256xf32> -> vector<104x256xf32>
    %c0_9 = arith.constant 0 : index
    %c0_10 = arith.constant 0 : index
    %10 = vector.load %arg5[%c0_9, %c0_10] : memref<1x256xf32, #tpu.memory_space<vmem>>, vector<1x256xf32>
    %11 = vector.broadcast %10 : vector<1x256xf32> to vector<104x256xf32>
    %12 = arith.addf %9, %11 : vector<104x256xf32>
    %cst_11 = arith.constant 0.000000e+00 : f32
    %13 = vector.broadcast %cst_11 : f32 to vector<104x256xf32>
    %14 = arith.maximumf %12, %13 : vector<104x256xf32>
    %c0_12 = arith.constant 0 : index
    %c0_13 = arith.constant 0 : index
    %15 = vector.load %arg6[%c0_12, %c0_13] : memref<256x128xf32, #tpu.memory_space<vmem>>, vector<256x128xf32>
    %cst_14 = arith.constant dense<0.000000e+00> : vector<104x128xf32>
    %16 = tpu.matmul %14, %15, %cst_14 {dimension_numbers = #tpu.dot_dimension_numbers<[1], [0], [0], [1], [0, 0, 1, 1], [], []>} : vector<104x256xf32>, vector<256x128xf32>, vector<104x128xf32> -> vector<104x128xf32>
    %c0_15 = arith.constant 0 : index
    %c0_16 = arith.constant 0 : index
    %17 = vector.load %arg7[%c0_15, %c0_16] : memref<1x128xf32, #tpu.memory_space<vmem>>, vector<1x128xf32>
    %18 = vector.broadcast %17 : vector<1x128xf32> to vector<104x128xf32>
    %19 = arith.addf %16, %18 : vector<104x128xf32>
    %c0_17 = arith.constant 0 : index
    %c0_18 = arith.constant 0 : index
    %20 = vector.load %arg8[%c0_17, %c0_18] : memref<104x128xf32, #tpu.memory_space<vmem>>, vector<104x128xf32>
    tpu.vector_store %arg8[%c0_17, %c0_18], %19 {strides = array<i32>} : memref<104x128xf32, #tpu.memory_space<vmem>>, vector<104x128xf32>,
    return
  }
  func.func @transform_0(%arg0: i32) -> (i32, i32) {
    %c0_i32 = arith.constant 0 : i32
    %c0_i32_0 = arith.constant 0 : i32
    return %arg0, %c0_i32 : i32, i32
  }
  func.func @transform_1(%arg0: i32) -> (i32, i32) {
    %c0_i32 = arith.constant 0 : i32
    %c0_i32_0 = arith.constant 0 : i32
    %c0_i32_1 = arith.constant 0 : i32
    return %c0_i32, %c0_i32_0 : i32, i32
  }
  func.func @transform_2(%arg0: i32) -> (i32, i32) {
    %c0_i32 = arith.constant 0 : i32
    %c0_i32_0 = arith.constant 0 : i32
    %c0_i32_1 = arith.constant 0 : i32
    return %c0_i32, %c0_i32_0 : i32, i32
  }
  func.func @transform_3(%arg0: i32) -> (i32, i32) {
    %c0_i32 = arith.constant 0 : i32
    %c0_i32_0 = arith.constant 0 : i32
    %c0_i32_1 = arith.constant 0 : i32
    return %c0_i32, %c0_i32_0 : i32, i32
  }
  func.func @transform_4(%arg0: i32) -> (i32, i32) {
    %c0_i32 = arith.constant 0 : i32
    %c0_i32_0 = arith.constant 0 : i32
    %c0_i32_1 = arith.constant 0 : i32
    return %c0_i32, %c0_i32_0 : i32, i32
  }
  func.func @transform_5(%arg0: i32) -> (i32, i32) {
    %c0_i32 = arith.constant 0 : i32
    %c0_i32_0 = arith.constant 0 : i32
    %c0_i32_1 = arith.constant 0 : i32
    return %c0_i32, %c0_i32_0 : i32, i32
  }
  func.func @transform_6(%arg0: i32) -> (i32, i32) {
    %c0_i32 = arith.constant 0 : i32
    %c0_i32_0 = arith.constant 0 : i32
    %c0_i32_1 = arith.constant 0 : i32
    return %c0_i32, %c0_i32_0 : i32, i32
  }
  func.func @transform_7(%arg0: i32) -> (i32, i32) {
    %c0_i32 = arith.constant 0 : i32
    %c0_i32_0 = arith.constant 0 : i32
    return %arg0, %c0_i32 : i32, i32
  }
}

</mosaic_0001>

<llo_original>
// kernel: dqn_forward.1
$region0: #{dqn_forward.1}
  #allocation0 [shape = 'u32[]', space=smem, size = 0x4, offset = 0x4, fixed_abs, tag = 'smem constant byte address 0x4 - core index']
  #allocation1 [shape = 'u32[144,128]{1,0:T(1,128)}', space=vmem, size = 0x12000, scoped, tag = 'internal scratch']
  %s0 = inlined_call_operand.vmem [shape: f32[200,16], index: 0, kind: input, shape index: {}]
  %s1 = inlined_call_operand.vmem [shape: f32[16,256], index: 1, kind: input, shape index: {}]
  %s2 = inlined_call_operand.vmem [shape: f32[1,256], index: 2, kind: input, shape index: {}]
  %s3 = inlined_call_operand.hbm [shape: f32[256,256], index: 3, kind: input, shape index: {}]
  %s4 = inlined_call_operand.vmem [shape: f32[1,256], index: 4, kind: input, shape index: {}]
  %s5 = inlined_call_operand.hbm [shape: f32[256,128], index: 5, kind: input, shape index: {}]
  %s6 = inlined_call_operand.vmem [shape: f32[1,128], index: 6, kind: input, shape index: {}]
  %s7 = inlined_call_operand.vmem [shape: f32[200,128], index: 7, kind: output, shape index: {}]
  %s8 = sld [smem:[#allocation0]]
  $region117: #{dqn_forward.1} parent=0
    _
  %s10 = ssub.s32 1, %s8
  %s11 = scalar_select 0, %s10, %s8
  $region1: #{dqn_forward.1} parent=0
    #allocation2 [shape = 'u8[262144]{0}', space=vmem, size = 0x40000, scoped, tag = 'input window, operand 3, single buffered']
    #allocation3 [shape = 's32[2]{0}', space=sflag, size = 0x8, scoped, tag = 'scoped memory for dqn_forward.1']
    #allocation4 [shape = 'u8[131072]{0}', space=vmem, size = 0x20000, scoped, tag = 'input window, operand 5, single buffered']
    #allocation5 [shape = 's32[1]{0}', space=sflag, size = 0x4, scoped, tag = 'scoped memory for dqn_forward.1']
    #allocation6 [shape = 'u8[106496]{0}', space=vmem, size = 0x1a000, scoped, tag = 'output window, operand 0']
    %12 = vsyncpa [#allocation3], 0
    %13 = vsyncpa [#allocation5], 0
    loop: start=0, step=1, limit=4
    $region2: #{dqn_forward.1} parent=1 // loop_pre_header
      _
    $region3: #{dqn_forward.1} parent=1 // loop_header
      %s15 = sphi 0, %s19
      %p16 = scmp.ge.s32.totalorder %s15, 4
      %s25 = sphi 0, %s27
      %s28 = sphi 0, %s25
      %s29 = sphi 0, %s28
      %s45 = sphi 0, %s29
      %s49 = sphi 0, %s49
      %s51 = sphi 0, %s49
      %s52 = sphi 0, %s51
      %s66 = sphi 0, %s52
      %s70 = sphi 0, %s70
      %s72 = sphi 0, %s70
      %s73 = sphi 0, %s72
      %s87 = sphi 0, %s73
      %s91 = sphi 0, %s91
      %s93 = sphi 0, %s91
      %s94 = sphi 0, %s93
      %s108 = sphi 0, %s94
      %s112 = sphi 0, %s112
      %s114 = sphi 0, %s112
      %s115 = sphi 0, %s114
      %s129 = sphi 0, %s115
      %s133 = sphi 0, %s133
      %s135 = sphi 0, %s133
      %s136 = sphi 0, %s135
      %s150 = sphi 0, %s136
      %s154 = sphi 0, %s154
      %s156 = sphi 0, %s154
      %s157 = sphi 0, %s156
      %s171 = sphi 0, %s157
      %s177 = sphi 0, %s179
      %s180 = sphi 0, %s177
      %s181 = sphi 0, %s180
      %s197 = sphi 0, %s181
    $region4: #{dqn_forward.1} parent=1 // loop_header_branch
      %18 = sbr.rel (%p16) target = $region8
    $region5: #{dqn_forward.1} parent=1 // loop_body
      %s20 = ssub.s32 %s15, 1
      %s21 = ssub.s32 %s15, 2
      %s22 = sadd.s32 %s15, 1
      %s23 = ssub.s32 %s15, %s22
      %p24 = scmp.eq.s32.totalorder %s23, 0
      %s26 = sadd.s32 %s25, 1
      %s27 = scalar_select %p24, %s25, %s26
      %p30 = pneg %p24
      %p31 = scmp.eq.s32.totalorder %s15, 1
      %p32 = por %p30, %p31
      %p33 = scmp.ne.s32.totalorder %s25, %s28
      %p34 = scmp.eq.s32.totalorder %s15, 0
      %p35 = por %p33, %p34
      %p36 = scmp.ne.s32.totalorder %s25, %s28
      %p37 = scmp.eq.s32.totalorder %s20, 1
      %p38 = por %p36, %p37
      %p39 = scmp.ne.s32.totalorder %s28, %s29
      %p40 = scmp.eq.s32.totalorder %s20, 0
      %p41 = por %p39, %p40
      %p42 = scmp.ne.s32.totalorder %s28, %s29
      %p43 = scmp.eq.s32.totalorder %s21, 1
      %p44 = por %p42, %p43
      %p46 = scmp.ne.s32.totalorder %s29, %s45
      %p47 = scmp.eq.s32.totalorder %s21, 0
      %p48 = por %p46, %p47
      %s50 = sadd.s32 %s49, 1
      %p53 = scmp.eq.s32.totalorder %s15, 1
      %p54 = scmp.ne.s32.totalorder %s49, %s51
      %p55 = scmp.eq.s32.totalorder %s15, 0
      %p56 = por %p54, %p55
      %p57 = scmp.ne.s32.totalorder %s49, %s51
      %p58 = scmp.eq.s32.totalorder %s20, 1
      %p59 = por %p57, %p58
      %p60 = scmp.ne.s32.totalorder %s51, %s52
      %p61 = scmp.eq.s32.totalorder %s20, 0
      %p62 = por %p60, %p61
      %p63 = scmp.ne.s32.totalorder %s51, %s52
      %p64 = scmp.eq.s32.totalorder %s21, 1
      %p65 = por %p63, %p64
      %p67 = scmp.ne.s32.totalorder %s52, %s66
      %p68 = scmp.eq.s32.totalorder %s21, 0
      %p69 = por %p67, %p68
      %s71 = sadd.s32 %s70, 1
      %p74 = scmp.eq.s32.totalorder %s15, 1
      %p75 = scmp.ne.s32.totalorder %s70, %s72
      %p76 = scmp.eq.s32.totalorder %s15, 0
      %p77 = por %p75, %p76
      %p78 = scmp.ne.s32.totalorder %s70, %s72
      %p79 = scmp.eq.s32.totalorder %s20, 1
      %p80 = por %p78, %p79
      %p81 = scmp.ne.s32.totalorder %s72, %s73
      %p82 = scmp.eq.s32.totalorder %s20, 0
      %p83 = por %p81, %p82
      %p84 = scmp.ne.s32.totalorder %s72, %s73
      %p85 = scmp.eq.s32.totalorder %s21, 1
      %p86 = por %p84, %p85
      %p88 = scmp.ne.s32.totalorder %s73, %s87
      %p89 = scmp.eq.s32.totalorder %s21, 0
      %p90 = por %p88, %p89
      %s92 = sadd.s32 %s91, 1
      %p95 = scmp.eq.s32.totalorder %s15, 1
      %p96 = scmp.ne.s32.totalorder %s91, %s93
      %p97 = scmp.eq.s32.totalorder %s15, 0
      %p98 = por %p96, %p97
      %p99 = scmp.ne.s32.totalorder %s91, %s93
      %p100 = scmp.eq.s32.totalorder %s20, 1
      %p101 = por %p99, %p100
      %p102 = scmp.ne.s32.totalorder %s93, %s94
      %p103 = scmp.eq.s32.totalorder %s20, 0
      %p104 = por %p102, %p103
      %p105 = scmp.ne.s32.totalorder %s93, %s94
      %p106 = scmp.eq.s32.totalorder %s21, 1
      %p107 = por %p105, %p106
      %p109 = scmp.ne.s32.totalorder %s94, %s108
      %p110 = scmp.eq.s32.totalorder %s21, 0
      %p111 = por %p109, %p110
      %s113 = sadd.s32 %s112, 1
      %p116 = scmp.eq.s32.totalorder %s15, 1
      %p117 = scmp.ne.s32.totalorder %s112, %s114
      %p118 = scmp.eq.s32.totalorder %s15, 0
      %p119 = por %p117, %p118
      %p120 = scmp.ne.s32.totalorder %s112, %s114
      %p121 = scmp.eq.s32.totalorder %s20, 1
      %p122 = por %p120, %p121
      %p123 = scmp.ne.s32.totalorder %s114, %s115
      %p124 = scmp.eq.s32.totalorder %s20, 0
      %p125 = por %p123, %p124
      %p126 = scmp.ne.s32.totalorder %s114, %s115
      %p127 = scmp.eq.s32.totalorder %s21, 1
      %p128 = por %p126, %p127
      %p130 = scmp.ne.s32.totalorder %s115, %s129
      %p131 = scmp.eq.s32.totalorder %s21, 0
      %p132 = por %p130, %p131
      %s134 = sadd.s32 %s133, 1
      %p137 = scmp.eq.s32.totalorder %s15, 1
      %p138 = scmp.ne.s32.totalorder %s133, %s135
      %p139 = scmp.eq.s32.totalorder %s15, 0
      %p140 = por %p138, %p139
      %p141 = scmp.ne.s32.totalorder %s133, %s135
      %p142 = scmp.eq.s32.totalorder %s20, 1
      %p143 = por %p141, %p142
      %p144 = scmp.ne.s32.totalorder %s135, %s136
      %p145 = scmp.eq.s32.totalorder %s20, 0
      %p146 = por %p144, %p145
      %p147 = scmp.ne.s32.totalorder %s135, %s136
      %p148 = scmp.eq.s32.totalorder %s21, 1
      %p149 = por %p147, %p148
      %p151 = scmp.ne.s32.totalorder %s136, %s150
      %p152 = scmp.eq.s32.totalorder %s21, 0
      %p153 = por %p151, %p152
      %s155 = sadd.s32 %s154, 1
      %p158 = scmp.eq.s32.totalorder %s15, 1
      %p159 = scmp.ne.s32.totalorder %s154, %s156
      %p160 = scmp.eq.s32.totalorder %s15, 0
      %p161 = por %p159, %p160
      %p162 = scmp.ne.s32.totalorder %s154, %s156
      %p163 = scmp.eq.s32.totalorder %s20, 1
      %p164 = por %p162, %p163
      %p165 = scmp.ne.s32.totalorder %s156, %s157
      %p166 = scmp.eq.s32.totalorder %s20, 0
      %p167 = por %p165, %p166
      %p168 = scmp.ne.s32.totalorder %s156, %s157
      %p169 = scmp.eq.s32.totalorder %s21, 1
      %p170 = por %p168, %p169
      %p172 = scmp.ne.s32.totalorder %s157, %s171
      %p173 = scmp.eq.s32.totalorder %s21, 0
      %p174 = por %p172, %p173
      %s175 = ssub.s32 %s15, %s22
      %p176 = scmp.eq.s32.totalorder %s175, 0
      %s178 = sadd.s32 %s177, 1
      %s179 = scalar_select %p176, %s177, %s178
      %p182 = pneg %p176
      %p183 = scmp.eq.s32.totalorder %s15, 1
      %p184 = por %p182, %p183
      %p185 = scmp.ne.s32.totalorder %s177, %s180
      %p186 = scmp.eq.s32.totalorder %s15, 0
      %p187 = por %p185, %p186
      %p188 = scmp.ne.s32.totalorder %s177, %s180
      %p189 = scmp.eq.s32.totalorder %s20, 1
      %p190 = por %p188, %p189
      %p191 = scmp.ne.s32.totalorder %s180, %s181
      %p192 = scmp.eq.s32.totalorder %s20, 0
      %p193 = por %p191, %p192
      %p194 = scmp.ne.s32.totalorder %s180, %s181
      %p195 = scmp.eq.s32.totalorder %s21, 1
      %p196 = por %p194, %p195
      %p198 = scmp.ne.s32.totalorder %s181, %s197
      %p199 = scmp.eq.s32.totalorder %s21, 0
      %p200 = por %p198, %p199
      %p201 = scmp.le.s32.totalorder 1, %s15
      %p202 = scmp.lt.s32.totalorder %s15, 3
      %p203 = pnand %p201, %p202
      %p204 = pneg %p203
      // Predicated region
      $region9: #{dqn_forward.1} parent=5 // pred_check
        _
      $region10: #{dqn_forward.1} parent=5 // pred_check_branch
        %206 = sbr.rel (%p203) target = $region12
      $region11: #{dqn_forward.1} parent=5 // pred_region
        %s207 = ssub.s32 %s15, 1
        // Predicated region
        $region13: #{dqn_forward.1} parent=11 // pred_check
          %p208 = pneg %p62
        $region14: #{dqn_forward.1} parent=11 // pred_check_branch
          %210 = sbr.rel (%p208) target = $region16
        $region15: #{dqn_forward.1} parent=11 // pred_region
          _
        $region16: #{dqn_forward.1} parent=11 // pred_fallthru
          _
        // Predicated region
        $region17: #{dqn_forward.1} parent=11 // pred_check
          %p211 = pneg %p83
        $region18: #{dqn_forward.1} parent=11 // pred_check_branch
          %213 = sbr.rel (%p211) target = $region20
        $region19: #{dqn_forward.1} parent=11 // pred_region
          _
        $region20: #{dqn_forward.1} parent=11 // pred_fallthru
          _
        // Predicated region
        $region21: #{dqn_forward.1} parent=11 // pred_check
          %p214 = pneg %p104
        $region22: #{dqn_forward.1} parent=11 // pred_check_branch
          %216 = sbr.rel (%p214) target = $region24
        $region23: #{dqn_forward.1} parent=11 // pred_region
          %s218 = ssub.s32 8192, 8192
          %219 = vsyncadd [#allocation3], %s218
          %s220 = sshll.u32 [#allocation2], 4
          %s221 = int_to_ptr.vmem [resolvable:$true] %s220
          %226 = dma.hbm_to_vmem [thread:$0]  %s3, 8192, %s221, [#allocation3], 256, 256, 16
        $region24: #{dqn_forward.1} parent=11 // pred_fallthru
          _
        // Predicated region
        $region25: #{dqn_forward.1} parent=11 // pred_check
          %p227 = pneg %p125
        $region26: #{dqn_forward.1} parent=11 // pred_check_branch
          %229 = sbr.rel (%p227) target = $region28
        $region27: #{dqn_forward.1} parent=11 // pred_region
          _
        $region28: #{dqn_forward.1} parent=11 // pred_fallthru
          _
        // Predicated region
        $region29: #{dqn_forward.1} parent=11 // pred_check
          %p230 = pneg %p146
        $region30: #{dqn_forward.1} parent=11 // pred_check_branch
          %232 = sbr.rel (%p230) target = $region32
        $region31: #{dqn_forward.1} parent=11 // pred_region
          %s234 = ssub.s32 4096, 4096
          %235 = vsyncadd [#allocation5], %s234
          %s236 = sshll.u32 [#allocation4], 4
          %s237 = int_to_ptr.vmem [resolvable:$true] %s236
          %242 = dma.hbm_to_vmem [thread:$0]  %s5, 4096, %s237, [#allocation5], 128, 128, 8
        $region32: #{dqn_forward.1} parent=11 // pred_fallthru
          _
        // Predicated region
        $region33: #{dqn_forward.1} parent=11 // pred_check
          %p243 = pneg %p167
        $region34: #{dqn_forward.1} parent=11 // pred_check_branch
          %245 = sbr.rel (%p243) target = $region36
        $region35: #{dqn_forward.1} parent=11 // pred_region
          _
        $region36: #{dqn_forward.1} parent=11 // pred_fallthru
          _
      $region12: #{dqn_forward.1} parent=5 // pred_fallthru
        _
      %p246 = scmp.lt.s32.totalorder %s15, 2
      // Predicated region
      $region37: #{dqn_forward.1} parent=5 // pred_check
        %p247 = pneg %p246
      $region38: #{dqn_forward.1} parent=5 // pred_check_branch
        %249 = sbr.rel (%p247) target = $region40
      $region39: #{dqn_forward.1} parent=5 // pred_region
        // Predicated region
        $region41: #{dqn_forward.1} parent=39 // pred_check
          %p250 = pneg %p35
        $region42: #{dqn_forward.1} parent=39 // pred_check_branch
          %252 = sbr.rel (%p250) target = $region44
        $region43: #{dqn_forward.1} parent=39 // pred_region
          %s253 = smul.u32 13, %s15
          %s254 = ssub.s32 25, %s253
          %p255 = scmp.lt.s32.totalorder %s254, 13
          %s256 = scalar_select %p255, %s254, 13
          %s257 = smul.u32 128, %s256
          %p258 = scmp.lt.s32.totalorder %s253, 24
          %s259 = scalar_select %p258, %s253, 24
          %s260 = smul.addr %s259, 8
          %s261 = scalar_lea.vmem %s0, %s260
          %s262 = smul.u32 13, %s15
          %s263 = ssub.s32 25, %s262
          %p264 = scmp.lt.s32.totalorder %s263, 13
          %s265 = scalar_select %p264, %s263, 13
          %s266 = smul.u32 128, %s265
        $region44: #{dqn_forward.1} parent=39 // pred_fallthru
          _
      $region40: #{dqn_forward.1} parent=5 // pred_fallthru
        _
      %p267 = scmp.le.s32.totalorder 1, %s15
      %p268 = scmp.lt.s32.totalorder %s15, 3
      %p269 = pnand %p267, %p268
      %p270 = pneg %p269
      // Predicated region
      $region45: #{dqn_forward.1} parent=5 // pred_check
        _
      $region46: #{dqn_forward.1} parent=5 // pred_check_branch
        %272 = sbr.rel (%p269) target = $region48
      $region47: #{dqn_forward.1} parent=5 // pred_region
        %s273 = ssub.s32 %s15, 1
        // Predicated region
        $region49: #{dqn_forward.1} parent=47 // pred_check
          %p274 = pneg %p104
        $region50: #{dqn_forward.1} parent=47 // pred_check_branch
          %276 = sbr.rel (%p274) target = $region52
        $region51: #{dqn_forward.1} parent=47 // pred_region
          %277 = dma.done [#allocation3], 8192
        $region52: #{dqn_forward.1} parent=47 // pred_fallthru
          _
        // Predicated region
        $region53: #{dqn_forward.1} parent=47 // pred_check
          %p278 = pneg %p146
        $region54: #{dqn_forward.1} parent=47 // pred_check_branch
          %280 = sbr.rel (%p278) target = $region56
        $region55: #{dqn_forward.1} parent=47 // pred_region
          %281 = dma.done [#allocation5], 4096
        $region56: #{dqn_forward.1} parent=47 // pred_fallthru
          _
        %s282 = smul.u32 13, %s20
        %s283 = ssub.s32 25, %s282
        %p284 = scmp.lt.s32.totalorder %s283, 13
        %s285 = scalar_select %p284, %s283, 13
        %s286 = smul.u32 128, %s285
        %p287 = scmp.lt.s32.totalorder %s282, 24
        %s288 = scalar_select %p287, %s282, 24
        %s289 = smul.addr %s288, 8
        %s290 = scalar_lea.vmem %s0, %s289
        %p291 = pneg %p41
        %p292 = pneg %p38
        %p293 = pneg %p62
        %p294 = pneg %p59
        %p295 = pneg %p83
        %p296 = pneg %p80
        %p297 = pneg %p104
        %p298 = pneg %p101
        %p299 = pneg %p125
        %p300 = pneg %p122
        %p301 = pneg %p146
        %p302 = pneg %p143
        %p303 = pneg %p167
        %p304 = pneg %p164
        %p305 = pneg %p193
        %p306 = pneg %p190
        %s307 = sand.u32 %s180, 1
        %s308 = sand.u32 %s180, 1
        %s309 = smul.addr %s308, 104
        %s310 = scalar_lea.vmem [#allocation6], %s309
        %s311 = smul.u32 13, %s20
        %s312 = ssub.s32 25, %s311
        %p313 = scmp.lt.s32.totalorder %s312, 13
        %s314 = scalar_select %p313, %s312, 13
        %s315 = smul.u32 128, %s314
        %p316 = scmp.lt.s32.totalorder %s311, 24
        %s317 = scalar_select %p316, %s311, 24
        %s318 = smul.addr %s317, 8
        %s319 = scalar_lea.vmem %s0, %s318
        %s320 = smul.u32 13, %s20
        %s321 = ssub.s32 25, %s320
        %p322 = scmp.lt.s32.totalorder %s321, 13
        %s323 = scalar_select %p322, %s321, 13
        %s324 = smul.u32 128, %s323
        %s325 = smul.u32 13, %s20
        %s326 = ssub.s32 25, %s325
        %p327 = scmp.lt.s32.totalorder %s326, 13
        %s328 = scalar_select %p327, %s326, 13
        %s329 = smul.u32 128, %s328
        %v330 = vld [vmem:[%s319] sm:$0xff]
        %v331 = vld [vmem:[%s319 + $0x8] sm:$0xff]
        %v332 = vld [vmem:[%s319 + $0x10] sm:$0xff]
        %v333 = vld [vmem:[%s319 + $0x18] sm:$0xff]
        %v334 = vld [vmem:[%s319 + $0x20] sm:$0xff]
        %v335 = vld [vmem:[%s319 + $0x28] sm:$0xff]
        %v336 = vld [vmem:[%s319 + $0x30] sm:$0xff]
        %v337 = vld [vmem:[%s319 + $0x38] sm:$0xff]
        %v338 = vld [vmem:[%s319 + $0x40] sm:$0xff]
        %v339 = vld [vmem:[%s319 + $0x48] sm:$0xff]
        %v340 = vld [vmem:[%s319 + $0x50] sm:$0xff]
        %v341 = vld [vmem:[%s319 + $0x58] sm:$0xff]
        %v342 = vld [vmem:[%s319 + $0x60] sm:$0xff]
        %v343 = vld [vmem:[%s1] sm:$0xff]
        %v344 = vld [vmem:[%s1 + $0x8] sm:$0xff]
        %v345 = vld [vmem:[%s1 + $0x10] sm:$0xff]
        %v346 = vld [vmem:[%s1 + $0x18] sm:$0xff]
        %v347 = vld [vmem:[%s2] sm:$0x3]
        %v349 = vlaneseq
        %v350 = vshrl.u32 %v349, 7
        %v351 = vsub.s32 0, %v350
        %v352 = vrot.slane %v347, %v351
        %v353 = vlaneseq
        %v354 = vshrl.u32 %v353, 7
        %v355 = vsub.s32 1, %v354
        %v356 = vrot.slane %v347, %v355
        %vm359 = vcmask 130048
        %v361 = vsel %vm359, %v330, 0
        %v364 = vsel %vm359, %v331, 0
        %v367 = vsel %vm359, %v332, 0
        %v370 = vsel %vm359, %v333, 0
        %v373 = vsel %vm359, %v334, 0
        %v376 = vsel %vm359, %v335, 0
        %v379 = vsel %vm359, %v336, 0
        %v382 = vsel %vm359, %v337, 0
        %v385 = vsel %vm359, %v338, 0
        %v388 = vsel %vm359, %v339, 0
        %v391 = vsel %vm359, %v340, 0
        %v394 = vsel %vm359, %v341, 0
        %v397 = vsel %vm359, %v342, 0
        %399 = vmatprep.subr.mxu0 %v344
        %400 = vmatpush1.msra.mxu0 %v343
        %401 = vmatprep.subr.mxu0 %v346
        %402 = vmatpush1.msra.mxu0 %v345
        %403 = vmatprep.subr.mxu0 0.0
        %404 = vmatpush1.msra.mxu0 0.0
        %405 = vmatprep.subr.mxu0 0.0
        %406 = vmatpush1.msra.mxu0 0.0
        %407 = vmatprep.subr.mxu0 0.0
        %408 = vmatpush1.msra.mxu0 0.0
        %409 = vmatprep.subr.mxu0 0.0
        %410 = vmatpush1.msra.mxu0 0.0
        %411 = vmatprep.subr.mxu0 0.0
        %412 = vmatpush1.msra.mxu0 0.0
        %413 = vmatprep.subr.mxu0 0.0
        %414 = vmatpush1.msra.mxu0 0.0
        %415 = vmatprep.subr.mxu0 0.0
        %416 = vmatpush1.msra.mxu0 0.0
        %417 = vmatprep.subr.mxu0 0.0
        %418 = vmatpush1.msra.mxu0 0.0
        %419 = vmatprep.subr.mxu0 0.0
        %420 = vmatpush1.msra.mxu0 0.0
        %421 = vmatprep.subr.mxu0 0.0
        %422 = vmatpush1.msra.mxu0 0.0
        %423 = vmatprep.subr.mxu0 0.0
        %424 = vmatpush1.msra.mxu0 0.0
        %425 = vmatprep.subr.mxu0 0.0
        %426 = vmatpush1.msra.mxu0 0.0
        %427 = vmatprep.subr.mxu0 0.0
        %428 = vmatpush1.msra.mxu0 0.0
        %429 = vmatprep.subr.mxu0 0.0
        %430 = vmatpush1.msra.mxu0 0.0
        %431 = vmatprep.subr.mxu0 0.0
        %432 = vmatpush1.msra.mxu0 0.0
        %433 = vmatprep.subr.mxu0 0.0
        %434 = vmatpush1.msra.mxu0 0.0
        %435 = vmatprep.subr.mxu0 0.0
        %436 = vmatpush1.msra.mxu0 0.0
        %437 = vmatprep.subr.mxu0 0.0
        %438 = vmatpush1.msra.mxu0 0.0
        %439 = vmatprep.subr.mxu0 0.0
        %440 = vmatpush1.msra.mxu0 0.0
        %441 = vmatprep.subr.mxu0 0.0
        %442 = vmatpush1.msra.mxu0 0.0
        %443 = vmatprep.subr.mxu0 0.0
        %444 = vmatpush1.msra.mxu0 0.0
        %445 = vmatprep.subr.mxu0 0.0
        %446 = vmatpush1.msra.mxu0 0.0
        %447 = vmatprep.subr.mxu0 0.0
        %448 = vmatpush1.msra.mxu0 0.0
        %449 = vmatprep.subr.mxu0 0.0
        %450 = vmatpush1.msra.mxu0 0.0
        %451 = vmatprep.subr.mxu0 0.0
        %452 = vmatpush1.msra.mxu0 0.0
        %453 = vmatprep.subr.mxu0 0.0
        %454 = vmatpush1.msra.mxu0 0.0
        %455 = vmatprep.subr.mxu0 0.0
        %456 = vmatpush1.msra.mxu0 0.0
        %457 = vmatprep.subr.mxu0 0.0
        %458 = vmatpush1.msra.mxu0 0.0
        %459 = vmatprep.subr.mxu0 0.0
        %460 = vmatpush1.msra.mxu0 0.0
        %461 = vmatprep.subr.mxu0 0.0
        %462 = vmatpush1.msra.mxu0 0.0
        %463 = vmatprep.mubr.f32.mxu0 0.0
        %464 = vmatmul.mubr.f32.gmra.mrb[0].mxu0 %v361
        %v465 = vpop.f32.mrb[0].mxu0
        %v466 = vadd.f32 %v352, %v465
        %v467 = vpop.f32.mrb[0].mxu0
        %v468 = vadd.f32 %v356, %v467
        %469 = vmatprep.mubr.f32.mxu0 0.0
        %470 = vmatmul.mubr.f32.gmra.mrb[0].mxu0 %v364
        %v471 = vpop.f32.mrb[0].mxu0
        %v472 = vadd.f32 %v352, %v471
        %v473 = vpop.f32.mrb[0].mxu0
        %v474 = vadd.f32 %v356, %v473
        %475 = vmatprep.mubr.f32.mxu0 0.0
        %476 = vmatmul.mubr.f32.gmra.mrb[0].mxu0 %v367
        %v477 = vpop.f32.mrb[0].mxu0
        %v478 = vadd.f32 %v352, %v477
        %v479 = vpop.f32.mrb[0].mxu0
        %v480 = vadd.f32 %v356, %v479
        %481 = vmatprep.mubr.f32.mxu0 0.0
        %482 = vmatmul.mubr.f32.gmra.mrb[0].mxu0 %v370
        %v483 = vpop.f32.mrb[0].mxu0
        %v484 = vadd.f32 %v352, %v483
        %v485 = vpop.f32.mrb[0].mxu0
        %v486 = vadd.f32 %v356, %v485
        %487 = vmatprep.mubr.f32.mxu0 0.0
        %488 = vmatmul.mubr.f32.gmra.mrb[0].mxu0 %v373
        %v489 = vpop.f32.mrb[0].mxu0
        %v490 = vadd.f32 %v352, %v489
        %v491 = vpop.f32.mrb[0].mxu0
        %v492 = vadd.f32 %v356, %v491
        %493 = vmatprep.mubr.f32.mxu0 0.0
        %494 = vmatmul.mubr.f32.gmra.mrb[0].mxu0 %v376
        %v495 = vpop.f32.mrb[0].mxu0
        %v496 = vadd.f32 %v352, %v495
        %v497 = vpop.f32.mrb[0].mxu0
        %v498 = vadd.f32 %v356, %v497
        %499 = vmatprep.mubr.f32.mxu0 0.0
        %500 = vmatmul.mubr.f32.gmra.mrb[0].mxu0 %v379
        %v501 = vpop.f32.mrb[0].mxu0
        %v502 = vadd.f32 %v352, %v501
        %v503 = vpop.f32.mrb[0].mxu0
        %v504 = vadd.f32 %v356, %v503
        %505 = vmatprep.mubr.f32.mxu0 0.0
        %506 = vmatmul.mubr.f32.gmra.mrb[0].mxu0 %v382
        %v507 = vpop.f32.mrb[0].mxu0
        %v508 = vadd.f32 %v352, %v507
        %v509 = vpop.f32.mrb[0].mxu0
        %v510 = vadd.f32 %v356, %v509
        %511 = vmatprep.mubr.f32.mxu0 0.0
        %512 = vmatmul.mubr.f32.gmra.mrb[0].mxu0 %v385
        %v513 = vpop.f32.mrb[0].mxu0
        %v514 = vadd.f32 %v352, %v513
        %v515 = vpop.f32.mrb[0].mxu0
        %v516 = vadd.f32 %v356, %v515
        %517 = vmatprep.mubr.f32.mxu0 0.0
        %518 = vmatmul.mubr.f32.gmra.mrb[0].mxu0 %v388
        %v519 = vpop.f32.mrb[0].mxu0
        %v520 = vadd.f32 %v352, %v519
        %v521 = vpop.f32.mrb[0].mxu0
        %v522 = vadd.f32 %v356, %v521
        %523 = vmatprep.mubr.f32.mxu0 0.0
        %524 = vmatmul.mubr.f32.gmra.mrb[0].mxu0 %v391
        %v525 = vpop.f32.mrb[0].mxu0
        %v526 = vadd.f32 %v352, %v525
        %v527 = vpop.f32.mrb[0].mxu0
        %v528 = vadd.f32 %v356, %v527
        %529 = vmatprep.mubr.f32.mxu0 0.0
        %530 = vmatmul.mubr.f32.gmra.mrb[0].mxu0 %v394
        %v531 = vpop.f32.mrb[0].mxu0
        %v532 = vadd.f32 %v352, %v531
        %v533 = vpop.f32.mrb[0].mxu0
        %v534 = vadd.f32 %v356, %v533
        %535 = vmatprep.mubr.f32.mxu0 0.0
        %536 = vmatmul.mubr.f32.gmra.mrb[0].mxu0 %v397
        %v537 = vpop.f32.mrb[0].mxu0
        %v538 = vadd.f32 %v352, %v537
        %v539 = vpop.f32.mrb[0].mxu0
        %v540 = vadd.f32 %v356, %v539
        %541 = vdwg.mxu0
        %v542 = vmax.f32 %v466, 0.0
        %v543 = vmax.f32 %v468, 0.0
        %v544 = vmax.f32 %v472, 0.0
        %v545 = vmax.f32 %v474, 0.0
        %v546 = vmax.f32 %v478, 0.0
        %v547 = vmax.f32 %v480, 0.0
        %v548 = vmax.f32 %v484, 0.0
        %v549 = vmax.f32 %v486, 0.0
        %v550 = vmax.f32 %v490, 0.0
        %v551 = vmax.f32 %v492, 0.0
        %v552 = vmax.f32 %v496, 0.0
        %v553 = vmax.f32 %v498, 0.0
        %v554 = vmax.f32 %v502, 0.0
        %v555 = vmax.f32 %v504, 0.0
        %v556 = vmax.f32 %v508, 0.0
        %v557 = vmax.f32 %v510, 0.0
        %v558 = vmax.f32 %v514, 0.0
        %v559 = vmax.f32 %v516, 0.0
        %v560 = vmax.f32 %v520, 0.0
        %v561 = vmax.f32 %v522, 0.0
        %v562 = vmax.f32 %v526, 0.0
        %v563 = vmax.f32 %v528, 0.0
        %v564 = vmax.f32 %v532, 0.0
        %v565 = vmax.f32 %v534, 0.0
        %v566 = vmax.f32 %v538, 0.0
        %v567 = vmax.f32 %v540, 0.0
        %v568 = vld [vmem:[#allocation2] sm:$0xff]
        %v569 = vld [vmem:[#allocation2 + $0x8] sm:$0xff]
        %v570 = vld [vmem:[#allocation2 + $0x10] sm:$0xff]
        %v571 = vld [vmem:[#allocation2 + $0x18] sm:$0xff]
        %v572 = vld [vmem:[#allocation2 + $0x20] sm:$0xff]
        %v573 = vld [vmem:[#allocation2 + $0x28] sm:$0xff]
        %v574 = vld [vmem:[#allocation2 + $0x30] sm:$0xff]
        %v575 = vld [vmem:[#allocation2 + $0x38] sm:$0xff]
        %v576 = vld [vmem:[#allocation2 + $0x40] sm:$0xff]
        %v577 = vld [vmem:[#allocation2 + $0x48] sm:$0xff]
        %v578 = vld [vmem:[#allocation2 + $0x50] sm:$0xff]
        %v579 = vld [vmem:[#allocation2 + $0x58] sm:$0xff]
        %v580 = vld [vmem:[#allocation2 + $0x60] sm:$0xff]
        %v581 = vld [vmem:[#allocation2 + $0x68] sm:$0xff]
        %v582 = vld [vmem:[#allocation2 + $0x70] sm:$0xff]
        %v583 = vld [vmem:[#allocation2 + $0x78] sm:$0xff]
        %v584 = vld [vmem:[#allocation2 + $0x80] sm:$0xff]
        %v585 = vld [vmem:[#allocation2 + $0x88] sm:$0xff]
        %v586 = vld [vmem:[#allocation2 + $0x90] sm:$0xff]
        %v587 = vld [vmem:[#allocation2 + $0x98] sm:$0xff]
        %v588 = vld [vmem:[#allocation2 + $0xa0] sm:$0xff]
        %v589 = vld [vmem:[#allocation2 + $0xa8] sm:$0xff]
        %v590 = vld [vmem:[#allocation2 + $0xb0] sm:$0xff]
        %v591 = vld [vmem:[#allocation2 + $0xb8] sm:$0xff]
        %v592 = vld [vmem:[#allocation2 + $0xc0] sm:$0xff]
        %v593 = vld [vmem:[#allocation2 + $0xc8] sm:$0xff]
        %v594 = vld [vmem:[#allocation2 + $0xd0] sm:$0xff]
        %v595 = vld [vmem:[#allocation2 + $0xd8] sm:$0xff]
        %v596 = vld [vmem:[#allocation2 + $0xe0] sm:$0xff]
        %v597 = vld [vmem:[#allocation2 + $0xe8] sm:$0xff]
        %v598 = vld [vmem:[#allocation2 + $0xf0] sm:$0xff]
        %v599 = vld [vmem:[#allocation2 + $0xf8] sm:$0xff]
        %v600 = vld [vmem:[#allocation2 + $0x100] sm:$0xff]
        %v601 = vld [vmem:[#allocation2 + $0x108] sm:$0xff]
        %v602 = vld [vmem:[#allocation2 + $0x110] sm:$0xff]
        %v603 = vld [vmem:[#allocation2 + $0x118] sm:$0xff]
        %v604 = vld [vmem:[#allocation2 + $0x120] sm:$0xff]
        %v605 = vld [vmem:[#allocation2 + $0x128] sm:$0xff]
        %v606 = vld [vmem:[#allocation2 + $0x130] sm:$0xff]
        %v607 = vld [vmem:[#allocation2 + $0x138] sm:$0xff]
        %v608 = vld [vmem:[#allocation2 + $0x140] sm:$0xff]
        %v609 = vld [vmem:[#allocation2 + $0x148] sm:$0xff]
        %v610 = vld [vmem:[#allocation2 + $0x150] sm:$0xff]
        %v611 = vld [vmem:[#allocation2 + $0x158] sm:$0xff]
        %v612 = vld [vmem:[#allocation2 + $0x160] sm:$0xff]
        %v613 = vld [vmem:[#allocation2 + $0x168] sm:$0xff]
        %v614 = vld [vmem:[#allocation2 + $0x170] sm:$0xff]
        %v615 = vld [vmem:[#allocation2 + $0x178] sm:$0xff]
        %v616 = vld [vmem:[#allocation2 + $0x180] sm:$0xff]
        %v617 = vld [vmem:[#allocation2 + $0x188] sm:$0xff]
        %v618 = vld [vmem:[#allocation2 + $0x190] sm:$0xff]
        %v619 = vld [vmem:[#allocation2 + $0x198] sm:$0xff]
        %v620 = vld [vmem:[#allocation2 + $0x1a0] sm:$0xff]
        %v621 = vld [vmem:[#allocation2 + $0x1a8] sm:$0xff]
        %v622 = vld [vmem:[#allocation2 + $0x1b0] sm:$0xff]
        %v623 = vld [vmem:[#allocation2 + $0x1b8] sm:$0xff]
        %v624 = vld [vmem:[#allocation2 + $0x1c0] sm:$0xff]
        %v625 = vld [vmem:[#allocation2 + $0x1c8] sm:$0xff]
        %v626 = vld [vmem:[#allocation2 + $0x1d0] sm:$0xff]
        %v627 = vld [vmem:[#allocation2 + $0x1d8] sm:$0xff]
        %v628 = vld [vmem:[#allocation2 + $0x1e0] sm:$0xff]
        %v629 = vld [vmem:[#allocation2 + $0x1e8] sm:$0xff]
        %v630 = vld [vmem:[#allocation2 + $0x1f0] sm:$0xff]
        %v631 = vld [vmem:[#allocation2 + $0x1f8] sm:$0xff]
        %v632 = vld [vmem:[%s4] sm:$0x3]
        %v634 = vlaneseq
        %v635 = vshrl.u32 %v634, 7
        %v636 = vsub.s32 0, %v635
        %v637 = vrot.slane %v632, %v636
        %v638 = vlaneseq
        %v639 = vshrl.u32 %v638, 7
        %v640 = vsub.s32 1, %v639
        %v641 = vrot.slane %v632, %v640
        %644 = vmatprep.subr.mxu0 %v569
        %645 = vmatpush1.msra.mxu0 %v568
        %646 = vmatprep.subr.mxu0 %v571
        %647 = vmatpush1.msra.mxu0 %v570
        %648 = vmatprep.subr.mxu0 %v573
        %649 = vmatpush1.msra.mxu0 %v572
        %650 = vmatprep.subr.mxu0 %v575
        %651 = vmatpush1.msra.mxu0 %v574
        %652 = vmatprep.subr.mxu0 %v577
        %653 = vmatpush1.msra.mxu0 %v576
        %654 = vmatprep.subr.mxu0 %v579
        %655 = vmatpush1.msra.mxu0 %v578
        %656 = vmatprep.subr.mxu0 %v581
        %657 = vmatpush1.msra.mxu0 %v580
        %658 = vmatprep.subr.mxu0 %v583
        %659 = vmatpush1.msra.mxu0 %v582
        %660 = vmatprep.subr.mxu0 %v585
        %661 = vmatpush1.msra.mxu0 %v584
        %662 = vmatprep.subr.mxu0 %v587
        %663 = vmatpush1.msra.mxu0 %v586
        %664 = vmatprep.subr.mxu0 %v589
        %665 = vmatpush1.msra.mxu0 %v588
        %666 = vmatprep.subr.mxu0 %v591
        %667 = vmatpush1.msra.mxu0 %v590
        %668 = vmatprep.subr.mxu0 %v593
        %669 = vmatpush1.msra.mxu0 %v592
        %670 = vmatprep.subr.mxu0 %v595
        %671 = vmatpush1.msra.mxu0 %v594
        %672 = vmatprep.subr.mxu0 %v597
        %673 = vmatpush1.msra.mxu0 %v596
        %674 = vmatprep.subr.mxu0 %v599
        %675 = vmatpush1.msra.mxu0 %v598
        %676 = vmatprep.subr.mxu0 %v601
        %677 = vmatpush1.msra.mxu0 %v600
        %678 = vmatprep.subr.mxu0 %v603
        %679 = vmatpush1.msra.mxu0 %v602
        %680 = vmatprep.subr.mxu0 %v605
        %681 = vmatpush1.msra.mxu0 %v604
        %682 = vmatprep.subr.mxu0 %v607
        %683 = vmatpush1.msra.mxu0 %v606
        %684 = vmatprep.subr.mxu0 %v609
        %685 = vmatpush1.msra.mxu0 %v608
        %686 = vmatprep.subr.mxu0 %v611
        %687 = vmatpush1.msra.mxu0 %v610
        %688 = vmatprep.subr.mxu0 %v613
        %689 = vmatpush1.msra.mxu0 %v612
        %690 = vmatprep.subr.mxu0 %v615
        %691 = vmatpush1.msra.mxu0 %v614
        %692 = vmatprep.subr.mxu0 %v617
        %693 = vmatpush1.msra.mxu0 %v616
        %694 = vmatprep.subr.mxu0 %v619
        %695 = vmatpush1.msra.mxu0 %v618
        %696 = vmatprep.subr.mxu0 %v621
        %697 = vmatpush1.msra.mxu0 %v620
        %698 = vmatprep.subr.mxu0 %v623
        %699 = vmatpush1.msra.mxu0 %v622
        %700 = vmatprep.subr.mxu0 %v625
        %701 = vmatpush1.msra.mxu0 %v624
        %702 = vmatprep.subr.mxu0 %v627
        %703 = vmatpush1.msra.mxu0 %v626
        %704 = vmatprep.subr.mxu0 %v629
        %705 = vmatpush1.msra.mxu0 %v628
        %706 = vmatprep.subr.mxu0 %v631
        %707 = vmatpush1.msra.mxu0 %v630
        %708 = vmatprep.mubr.f32.mxu0 %v543
        %709 = vmatmul.mubr.f32.gmra.mrb[0].mxu0 %v542
        %v710 = vpop.f32.mrb[0].mxu0
        %v711 = vadd.f32 %v637, %v710
        %v712 = vpop.f32.mrb[0].mxu0
        %v713 = vadd.f32 %v641, %v712
        %714 = vmatprep.mubr.f32.mxu0 %v545
        %715 = vmatmul.mubr.f32.gmra.mrb[0].mxu0 %v544
        %v716 = vpop.f32.mrb[0].mxu0
        %v717 = vadd.f32 %v637, %v716
        %v718 = vpop.f32.mrb[0].mxu0
        %v719 = vadd.f32 %v641, %v718
        %720 = vmatprep.mubr.f32.mxu0 %v547
        %721 = vmatmul.mubr.f32.gmra.mrb[0].mxu0 %v546
        %v722 = vpop.f32.mrb[0].mxu0
        %v723 = vadd.f32 %v637, %v722
        %v724 = vpop.f32.mrb[0].mxu0
        %v725 = vadd.f32 %v641, %v724
        %726 = vmatprep.mubr.f32.mxu0 %v549
        %727 = vmatmul.mubr.f32.gmra.mrb[0].mxu0 %v548
        %v728 = vpop.f32.mrb[0].mxu0
        %v729 = vadd.f32 %v637, %v728
        %v730 = vpop.f32.mrb[0].mxu0
        %v731 = vadd.f32 %v641, %v730
        %732 = vmatprep.mubr.f32.mxu0 %v551
        %733 = vmatmul.mubr.f32.gmra.mrb[0].mxu0 %v550
        %v734 = vpop.f32.mrb[0].mxu0
        %v735 = vadd.f32 %v637, %v734
        %v736 = vpop.f32.mrb[0].mxu0
        %v737 = vadd.f32 %v641, %v736
        %738 = vmatprep.mubr.f32.mxu0 %v553
        %739 = vmatmul.mubr.f32.gmra.mrb[0].mxu0 %v552
        %v740 = vpop.f32.mrb[0].mxu0
        %v741 = vadd.f32 %v637, %v740
        %v742 = vpop.f32.mrb[0].mxu0
        %v743 = vadd.f32 %v641, %v742
        %744 = vmatprep.mubr.f32.mxu0 %v555
        %745 = vmatmul.mubr.f32.gmra.mrb[0].mxu0 %v554
        %v746 = vpop.f32.mrb[0].mxu0
        %v747 = vadd.f32 %v637, %v746
        %v748 = vpop.f32.mrb[0].mxu0
        %v749 = vadd.f32 %v641, %v748
        %750 = vmatprep.mubr.f32.mxu0 %v557
        %751 = vmatmul.mubr.f32.gmra.mrb[0].mxu0 %v556
        %v752 = vpop.f32.mrb[0].mxu0
        %v753 = vadd.f32 %v637, %v752
        %v754 = vpop.f32.mrb[0].mxu0
        %v755 = vadd.f32 %v641, %v754
        %756 = vmatprep.mubr.f32.mxu0 %v559
        %757 = vmatmul.mubr.f32.gmra.mrb[0].mxu0 %v558
        %v758 = vpop.f32.mrb[0].mxu0
        %v759 = vadd.f32 %v637, %v758
        %v760 = vpop.f32.mrb[0].mxu0
        %v761 = vadd.f32 %v641, %v760
        %762 = vmatprep.mubr.f32.mxu0 %v561
        %763 = vmatmul.mubr.f32.gmra.mrb[0].mxu0 %v560
        %v764 = vpop.f32.mrb[0].mxu0
        %v765 = vadd.f32 %v637, %v764
        %v766 = vpop.f32.mrb[0].mxu0
        %v767 = vadd.f32 %v641, %v766
        %768 = vmatprep.mubr.f32.mxu0 %v563
        %769 = vmatmul.mubr.f32.gmra.mrb[0].mxu0 %v562
        %v770 = vpop.f32.mrb[0].mxu0
        %v771 = vadd.f32 %v637, %v770
        %v772 = vpop.f32.mrb[0].mxu0
        %v773 = vadd.f32 %v641, %v772
        %774 = vmatprep.mubr.f32.mxu0 %v565
        %775 = vmatmul.mubr.f32.gmra.mrb[0].mxu0 %v564
        %v776 = vpop.f32.mrb[0].mxu0
        %v777 = vadd.f32 %v637, %v776
        %v778 = vpop.f32.mrb[0].mxu0
        %v779 = vadd.f32 %v641, %v778
        %780 = vmatprep.mubr.f32.mxu0 %v567
        %781 = vmatmul.mubr.f32.gmra.mrb[0].mxu0 %v566
        %v782 = vpop.f32.mrb[0].mxu0
        %v783 = vadd.f32 %v637, %v782
        %v784 = vpop.f32.mrb[0].mxu0
        %v785 = vadd.f32 %v641, %v784
        %786 = vdwg.mxu0
        %v787 = vmax.f32 %v711, 0.0
        %v788 = vmax.f32 %v713, 0.0
        %v789 = vmax.f32 %v717, 0.0
        %v790 = vmax.f32 %v719, 0.0
        %v791 = vmax.f32 %v723, 0.0
        %v792 = vmax.f32 %v725, 0.0
        %v793 = vmax.f32 %v729, 0.0
        %v794 = vmax.f32 %v731, 0.0
        %v795 = vmax.f32 %v735, 0.0
        %v796 = vmax.f32 %v737, 0.0
        %v797 = vmax.f32 %v741, 0.0
        %v798 = vmax.f32 %v743, 0.0
        %v799 = vmax.f32 %v747, 0.0
        %v800 = vmax.f32 %v749, 0.0
        %v801 = vmax.f32 %v753, 0.0
        %v802 = vmax.f32 %v755, 0.0
        %v803 = vmax.f32 %v759, 0.0
        %v804 = vmax.f32 %v761, 0.0
        %v805 = vmax.f32 %v765, 0.0
        %v806 = vmax.f32 %v767, 0.0
        %v807 = vmax.f32 %v771, 0.0
        %v808 = vmax.f32 %v773, 0.0
        %v809 = vmax.f32 %v777, 0.0
        %v810 = vmax.f32 %v779, 0.0
        %v811 = vmax.f32 %v783, 0.0
        %v812 = vmax.f32 %v785, 0.0
        %v813 = vld [vmem:[#allocation4] sm:$0xff]
        %v814 = vld [vmem:[#allocation4 + $0x8] sm:$0xff]
        %v815 = vld [vmem:[#allocation4 + $0x10] sm:$0xff]
        %v816 = vld [vmem:[#allocation4 + $0x18] sm:$0xff]
        %v817 = vld [vmem:[#allocation4 + $0x20] sm:$0xff]
        %v818 = vld [vmem:[#allocation4 + $0x28] sm:$0xff]
        %v819 = vld [vmem:[#allocation4 + $0x30] sm:$0xff]
        %v820 = vld [vmem:[#allocation4 + $0x38] sm:$0xff]
        %v821 = vld [vmem:[#allocation4 + $0x40] sm:$0xff]
        %v822 = vld [vmem:[#allocation4 + $0x48] sm:$0xff]
        %v823 = vld [vmem:[#allocation4 + $0x50] sm:$0xff]
        %v824 = vld [vmem:[#allocation4 + $0x58] sm:$0xff]
        %v825 = vld [vmem:[#allocation4 + $0x60] sm:$0xff]
        %v826 = vld [vmem:[#allocation4 + $0x68] sm:$0xff]
        %v827 = vld [vmem:[#allocation4 + $0x70] sm:$0xff]
        %v828 = vld [vmem:[#allocation4 + $0x78] sm:$0xff]
        %v829 = vld [vmem:[#allocation4 + $0x80] sm:$0xff]
        %v830 = vld [vmem:[#allocation4 + $0x88] sm:$0xff]
        %v831 = vld [vmem:[#allocation4 + $0x90] sm:$0xff]
        %v832 = vld [vmem:[#allocation4 + $0x98] sm:$0xff]
        %v833 = vld [vmem:[#allocation4 + $0xa0] sm:$0xff]
        %v834 = vld [vmem:[#allocation4 + $0xa8] sm:$0xff]
        %v835 = vld [vmem:[#allocation4 + $0xb0] sm:$0xff]
        %v836 = vld [vmem:[#allocation4 + $0xb8] sm:$0xff]
        %v837 = vld [vmem:[#allocation4 + $0xc0] sm:$0xff]
        %v838 = vld [vmem:[#allocation4 + $0xc8] sm:$0xff]
        %v839 = vld [vmem:[#allocation4 + $0xd0] sm:$0xff]
        %v840 = vld [vmem:[#allocation4 + $0xd8] sm:$0xff]
        %v841 = vld [vmem:[#allocation4 + $0xe0] sm:$0xff]
        %v842 = vld [vmem:[#allocation4 + $0xe8] sm:$0xff]
        %v843 = vld [vmem:[#allocation4 + $0xf0] sm:$0xff]
        %v844 = vld [vmem:[#allocation4 + $0xf8] sm:$0xff]
        %v845 = vld [vmem:[%s6] sm:$0x1]
        %v847 = vlaneseq
        %v848 = vshrl.u32 %v847, 7
        %v849 = vsub.s32 0, %v848
        %v850 = vrot.slane %v845, %v849
        %852 = vmatprep.subr.mxu0 0.0
        %853 = vmatpush1.msra.mxu0 %v813
        %854 = vmatprep.subr.mxu0 0.0
        %855 = vmatpush1.msra.mxu0 %v814
        %856 = vmatprep.subr.mxu0 0.0
        %857 = vmatpush1.msra.mxu0 %v815
        %858 = vmatprep.subr.mxu0 0.0
        %859 = vmatpush1.msra.mxu0 %v816
        %860 = vmatprep.subr.mxu0 0.0
        %861 = vmatpush1.msra.mxu0 %v817
        %862 = vmatprep.subr.mxu0 0.0
        %863 = vmatpush1.msra.mxu0 %v818
        %864 = vmatprep.subr.mxu0 0.0
        %865 = vmatpush1.msra.mxu0 %v819
        %866 = vmatprep.subr.mxu0 0.0
        %867 = vmatpush1.msra.mxu0 %v820
        %868 = vmatprep.subr.mxu0 0.0
        %869 = vmatpush1.msra.mxu0 %v821
        %870 = vmatprep.subr.mxu0 0.0
        %871 = vmatpush1.msra.mxu0 %v822
        %872 = vmatprep.subr.mxu0 0.0
        %873 = vmatpush1.msra.mxu0 %v823
        %874 = vmatprep.subr.mxu0 0.0
        %875 = vmatpush1.msra.mxu0 %v824
        %876 = vmatprep.subr.mxu0 0.0
        %877 = vmatpush1.msra.mxu0 %v825
        %878 = vmatprep.subr.mxu0 0.0
        %879 = vmatpush1.msra.mxu0 %v826
        %880 = vmatprep.subr.mxu0 0.0
        %881 = vmatpush1.msra.mxu0 %v827
        %882 = vmatprep.subr.mxu0 0.0
        %883 = vmatpush1.msra.mxu0 %v828
        %884 = vmatprep.subr.mxu0 0.0
        %885 = vmatpush1.msra.mxu0 %v829
        %886 = vmatprep.subr.mxu0 0.0
        %887 = vmatpush1.msra.mxu0 %v830
        %888 = vmatprep.subr.mxu0 0.0
        %889 = vmatpush1.msra.mxu0 %v831
        %890 = vmatprep.subr.mxu0 0.0
        %891 = vmatpush1.msra.mxu0 %v832
        %892 = vmatprep.subr.mxu0 0.0
        %893 = vmatpush1.msra.mxu0 %v833
        %894 = vmatprep.subr.mxu0 0.0
        %895 = vmatpush1.msra.mxu0 %v834
        %896 = vmatprep.subr.mxu0 0.0
        %897 = vmatpush1.msra.mxu0 %v835
        %898 = vmatprep.subr.mxu0 0.0
        %899 = vmatpush1.msra.mxu0 %v836
        %900 = vmatprep.subr.mxu0 0.0
        %901 = vmatpush1.msra.mxu0 %v837
        %902 = vmatprep.subr.mxu0 0.0
        %903 = vmatpush1.msra.mxu0 %v838
        %904 = vmatprep.subr.mxu0 0.0
        %905 = vmatpush1.msra.mxu0 %v839
        %906 = vmatprep.subr.mxu0 0.0
        %907 = vmatpush1.msra.mxu0 %v840
        %908 = vmatprep.subr.mxu0 0.0
        %909 = vmatpush1.msra.mxu0 %v841
        %910 = vmatprep.subr.mxu0 0.0
        %911 = vmatpush1.msra.mxu0 %v842
        %912 = vmatprep.subr.mxu0 0.0
        %913 = vmatpush1.msra.mxu0 %v843
        %914 = vmatprep.subr.mxu0 0.0
        %915 = vmatpush1.msra.mxu0 %v844
        %916 = vmatprep.mubr.f32.mxu0 %v788
        %917 = vmatmul.mubr.f32.gmra.mrb[0].mxu0 %v787
        %v918 = vpop.f32.mrb[0].mxu0
        %v919 = vadd.f32 %v850, %v918
        %v920 = vpop.f32.mrb[0].mxu0
        %921 = vmatprep.mubr.f32.mxu0 %v790
        %922 = vmatmul.mubr.f32.gmra.mrb[0].mxu0 %v789
        %v923 = vpop.f32.mrb[0].mxu0
        %v924 = vadd.f32 %v850, %v923
        %v925 = vpop.f32.mrb[0].mxu0
        %926 = vmatprep.mubr.f32.mxu0 %v792
        %927 = vmatmul.mubr.f32.gmra.mrb[0].mxu0 %v791
        %v928 = vpop.f32.mrb[0].mxu0
        %v929 = vadd.f32 %v850, %v928
        %v930 = vpop.f32.mrb[0].mxu0
        %931 = vmatprep.mubr.f32.mxu0 %v794
        %932 = vmatmul.mubr.f32.gmra.mrb[0].mxu0 %v793
        %v933 = vpop.f32.mrb[0].mxu0
        %v934 = vadd.f32 %v850, %v933
        %v935 = vpop.f32.mrb[0].mxu0
        %936 = vmatprep.mubr.f32.mxu0 %v796
        %937 = vmatmul.mubr.f32.gmra.mrb[0].mxu0 %v795
        %v938 = vpop.f32.mrb[0].mxu0
        %v939 = vadd.f32 %v850, %v938
        %v940 = vpop.f32.mrb[0].mxu0
        %941 = vmatprep.mubr.f32.mxu0 %v798
        %942 = vmatmul.mubr.f32.gmra.mrb[0].mxu0 %v797
        %v943 = vpop.f32.mrb[0].mxu0
        %v944 = vadd.f32 %v850, %v943
        %v945 = vpop.f32.mrb[0].mxu0
        %946 = vmatprep.mubr.f32.mxu0 %v800
        %947 = vmatmul.mubr.f32.gmra.mrb[0].mxu0 %v799
        %v948 = vpop.f32.mrb[0].mxu0
        %v949 = vadd.f32 %v850, %v948
        %v950 = vpop.f32.mrb[0].mxu0
        %951 = vmatprep.mubr.f32.mxu0 %v802
        %952 = vmatmul.mubr.f32.gmra.mrb[0].mxu0 %v801
        %v953 = vpop.f32.mrb[0].mxu0
        %v954 = vadd.f32 %v850, %v953
        %v955 = vpop.f32.mrb[0].mxu0
        %956 = vmatprep.mubr.f32.mxu0 %v804
        %957 = vmatmul.mubr.f32.gmra.mrb[0].mxu0 %v803
        %v958 = vpop.f32.mrb[0].mxu0
        %v959 = vadd.f32 %v850, %v958
        %v960 = vpop.f32.mrb[0].mxu0
        %961 = vmatprep.mubr.f32.mxu0 %v806
        %962 = vmatmul.mubr.f32.gmra.mrb[0].mxu0 %v805
        %v963 = vpop.f32.mrb[0].mxu0
        %v964 = vadd.f32 %v850, %v963
        %v965 = vpop.f32.mrb[0].mxu0
        %966 = vmatprep.mubr.f32.mxu0 %v808
        %967 = vmatmul.mubr.f32.gmra.mrb[0].mxu0 %v807
        %v968 = vpop.f32.mrb[0].mxu0
        %v969 = vadd.f32 %v850, %v968
        %v970 = vpop.f32.mrb[0].mxu0
        %971 = vmatprep.mubr.f32.mxu0 %v810
        %972 = vmatmul.mubr.f32.gmra.mrb[0].mxu0 %v809
        %v973 = vpop.f32.mrb[0].mxu0
        %v974 = vadd.f32 %v850, %v973
        %v975 = vpop.f32.mrb[0].mxu0
        %976 = vmatprep.mubr.f32.mxu0 %v812
        %977 = vmatmul.mubr.f32.gmra.mrb[0].mxu0 %v811
        %v978 = vpop.f32.mrb[0].mxu0
        %v979 = vadd.f32 %v850, %v978
        %v980 = vpop.f32.mrb[0].mxu0
        %981 = vdwg.mxu0
        %982 = vst [vmem:[%s310] sm:$0xff] %v919
        %983 = vst [vmem:[%s310 + $0x8] sm:$0xff] %v924
        %984 = vst [vmem:[%s310 + $0x10] sm:$0xff] %v929
        %985 = vst [vmem:[%s310 + $0x18] sm:$0xff] %v934
        %986 = vst [vmem:[%s310 + $0x20] sm:$0xff] %v939
        %987 = vst [vmem:[%s310 + $0x28] sm:$0xff] %v944
        %988 = vst [vmem:[%s310 + $0x30] sm:$0xff] %v949
        %989 = vst [vmem:[%s310 + $0x38] sm:$0xff] %v954
        %990 = vst [vmem:[%s310 + $0x40] sm:$0xff] %v959
        %991 = vst [vmem:[%s310 + $0x48] sm:$0xff] %v964
        %992 = vst [vmem:[%s310 + $0x50] sm:$0xff] %v969
        %993 = vst [vmem:[%s310 + $0x58] sm:$0xff] %v974
        %994 = vst [vmem:[%s310 + $0x60] sm:$0xff] %v979
        %s995 = sand.u32 %s180, 1
        %s996 = sand.u32 %s180, 1
        %s997 = smul.addr %s996, 104
        %s998 = scalar_lea.vmem [#allocation6], %s997
        // Predicated region
        $region57: #{dqn_forward.1} parent=47 // pred_check
          %p999 = pneg %p190
        $region58: #{dqn_forward.1} parent=47 // pred_check_branch
          %1001 = sbr.rel (%p999) target = $region60
        $region59: #{dqn_forward.1} parent=47 // pred_region
          %s1002 = smul.u32 13, %s20
          %s1003 = ssub.s32 25, %s1002
          %p1004 = scmp.lt.s32.totalorder %s1003, 13
          %s1005 = scalar_select %p1004, %s1003, 13
          %s1006 = smul.u32 128, %s1005
          %p1007 = scmp.ne.s32.totalorder 0, %s1006
          %s1008 = smul.addr %s1002, 8
          %s1009 = scalar_lea.vmem %s7, %s1008
          // Predicated region
          $region61: #{dqn_forward.1} parent=59 // pred_check
            %p1010 = pneg %p1007
          $region62: #{dqn_forward.1} parent=59 // pred_check_branch
            %1012 = sbr.rel (%p1010) target = $region64
          $region63: #{dqn_forward.1} parent=59 // pred_region
            // Predicated region
            $region65: #{dqn_forward.1} parent=63 // pred_check
              _
            $region66: #{dqn_forward.1} parent=63 // pred_check_branch
              %1014 = sbr.rel (0) target = $region68
            $region67: #{dqn_forward.1} parent=63 // pred_region
              // Predicated region
              $region87: #{dqn_forward.1} parent=67 // pred_check
                _
              $region88: #{dqn_forward.1} parent=67 // pred_check_branch
                %1088 = sbr.rel (0) target = $region90
              $region89: #{dqn_forward.1} parent=67 // pred_region
                %s1089 = sdiv.u32.pop %s1005, 13
                %s1090 = srem.u32.pop %s1005, 13
                // While loop
                $region91: #{dqn_forward.1} parent=89 // loop_pre_header
                  _
                $region92: #{dqn_forward.1} parent=89 // loop_header
                  %s1092 = sphi 0, %s1094
                  %p1093 = scmp.ge.s32.totalorder %s1092, %s1089
                  %s1097 = sphi 0, %s1128
                  %s1098 = sphi %s998, %s1131
                  %s1099 = sphi %s1009, %s1132
                $region93: #{dqn_forward.1} parent=89 // loop_header_branch
                  %1096 = sbr.rel (%p1093) target = $region97
                $region94: #{dqn_forward.1} parent=89 // loop_body
                  %v1100 = vld [vmem:[%s1098] sm:$0xff]
                  %1101 = vst [vmem:[%s1099] sm:$0xff] %v1100
                  %v1102 = vld [vmem:[%s1098 + $0x8] sm:$0xff]
                  %1103 = vst [vmem:[%s1099 + $0x8] sm:$0xff] %v1102
                  %v1104 = vld [vmem:[%s1098 + $0x10] sm:$0xff]
                  %1105 = vst [vmem:[%s1099 + $0x10] sm:$0xff] %v1104
                  %v1106 = vld [vmem:[%s1098 + $0x18] sm:$0xff]
                  %1107 = vst [vmem:[%s1099 + $0x18] sm:$0xff] %v1106
                  %v1108 = vld [vmem:[%s1098 + $0x20] sm:$0xff]
                  %1109 = vst [vmem:[%s1099 + $0x20] sm:$0xff] %v1108
                  %v1110 = vld [vmem:[%s1098 + $0x28] sm:$0xff]
                  %1111 = vst [vmem:[%s1099 + $0x28] sm:$0xff] %v1110
                  %v1112 = vld [vmem:[%s1098 + $0x30] sm:$0xff]
                  %1113 = vst [vmem:[%s1099 + $0x30] sm:$0xff] %v1112
                  %v1114 = vld [vmem:[%s1098 + $0x38] sm:$0xff]
                  %1115 = vst [vmem:[%s1099 + $0x38] sm:$0xff] %v1114
                  %v1116 = vld [vmem:[%s1098 + $0x40] sm:$0xff]
                  %1117 = vst [vmem:[%s1099 + $0x40] sm:$0xff] %v1116
                  %v1118 = vld [vmem:[%s1098 + $0x48] sm:$0xff]
                  %1119 = vst [vmem:[%s1099 + $0x48] sm:$0xff] %v1118
                  %v1120 = vld [vmem:[%s1098 + $0x50] sm:$0xff]
                  %1121 = vst [vmem:[%s1099 + $0x50] sm:$0xff] %v1120
                  %v1122 = vld [vmem:[%s1098 + $0x58] sm:$0xff]
                  %1123 = vst [vmem:[%s1099 + $0x58] sm:$0xff] %v1122
                  %v1124 = vld [vmem:[%s1098 + $0x60] sm:$0xff]
                  %1125 = vst [vmem:[%s1099 + $0x60] sm:$0xff] %v1124
                  %s1126 = sadd.s32 1, %s1097
                  %p1127 = scmp.ge.s32.totalorder %s1126, %s1089
                  %s1128 = scalar_select %p1127, 0, %s1126
                  %s1129 = smul.u32 %s1128, 104
                  %s1130 = smul.u32 %s1128, 104
                  %s1131 = scalar_lea.vmem %s998, %s1129 [#allocation6]
                  %s1132 = scalar_lea.vmem %s1009, %s1130
                $region95: #{dqn_forward.1} parent=89 // loop_footer
                  %s1094 = sadd.s32 %s1092, 1
                $region96: #{dqn_forward.1} parent=89 // loop_footer_branch
                  %1091 = sbr.rel target = $region92
                $region97: #{dqn_forward.1} parent=89 // loop_exit
                  _
                %s1133 = sdiv.u32.pop %s1005, 13
                %s1134 = srem.u32.pop %s1005, 13
                %s1135 = smul.u32 %s1133, 13
                %s1136 = smul.u32 8, %s1135
                %s1137 = scalar_lea.vmem %s998, %s1136 [#allocation6]
                %s1138 = smul.u32 8, %s1135
                %s1139 = scalar_lea.vmem %s1009, %s1138
                // While loop
                $region98: #{dqn_forward.1} parent=89 // loop_pre_header
                  _
                $region99: #{dqn_forward.1} parent=89 // loop_header
                  %s1141 = sphi 0, %s1143
                  %p1142 = scmp.ge.s32.totalorder %s1141, %s1134
                  %s1146 = sphi 0, %s1153
                  %s1147 = sphi %s1137, %s1156
                  %s1148 = sphi %s1139, %s1157
                $region100: #{dqn_forward.1} parent=89 // loop_header_branch
                  %1145 = sbr.rel (%p1142) target = $region104
                $region101: #{dqn_forward.1} parent=89 // loop_body
                  %v1149 = vld [vmem:[%s1147] sm:$0xff]
                  %1150 = vst [vmem:[%s1148] sm:$0xff] %v1149
                  %s1151 = sadd.s32 1, %s1146
                  %p1152 = scmp.ge.s32.totalorder %s1151, %s1134
                  %s1153 = scalar_select %p1152, 0, %s1151
                  %s1154 = smul.u32 %s1153, 8
                  %s1155 = smul.u32 %s1153, 8
                  %s1156 = scalar_lea.vmem %s1137, %s1154 [#allocation6]
                  %s1157 = scalar_lea.vmem %s1139, %s1155
                $region102: #{dqn_forward.1} parent=89 // loop_footer
                  %s1143 = sadd.s32 %s1141, 1
                $region103: #{dqn_forward.1} parent=89 // loop_footer_branch
                  %1140 = sbr.rel target = $region99
                $region104: #{dqn_forward.1} parent=89 // loop_exit
                  _
              $region90: #{dqn_forward.1} parent=67 // pred_fallthru
                _
              // Predicated region
              $region105: #{dqn_forward.1} parent=67 // pred_check
                _
              $region106: #{dqn_forward.1} parent=67 // pred_check_branch
                %1159 = sbr.rel target = $region108
              $region107: #{dqn_forward.1} parent=67 // pred_region
                _
              $region108: #{dqn_forward.1} parent=67 // pred_fallthru
                _
            $region68: #{dqn_forward.1} parent=63 // pred_fallthru
              _
            // Predicated region
            $region69: #{dqn_forward.1} parent=63 // pred_check
              _
            $region70: #{dqn_forward.1} parent=63 // pred_check_branch
              %1016 = sbr.rel target = $region72
            $region71: #{dqn_forward.1} parent=63 // pred_region
              %s1018 = sdiv.u32.pop %s1005, 13
              %s1019 = srem.u32.pop %s1005, 13
              // While loop
              $region73: #{dqn_forward.1} parent=71 // loop_pre_header
                _
              $region74: #{dqn_forward.1} parent=71 // loop_header
                %s1021 = sphi 0, %s1023
                %p1022 = scmp.ge.s32.totalorder %s1021, %s1018
                %s1026 = sphi 0, %s1057
                %s1027 = sphi %s998, %s1060
                %s1028 = sphi %s1009, %s1061
              $region75: #{dqn_forward.1} parent=71 // loop_header_branch
                %1025 = sbr.rel (%p1022) target = $region79
              $region76: #{dqn_forward.1} parent=71 // loop_body
                %v1029 = vld [vmem:[%s1027] sm:$0xff]
                %1030 = vst [vmem:[%s1028] sm:$0xff] %v1029
                %v1031 = vld [vmem:[%s1027 + $0x8] sm:$0xff]
                %1032 = vst [vmem:[%s1028 + $0x8] sm:$0xff] %v1031
                %v1033 = vld [vmem:[%s1027 + $0x10] sm:$0xff]
                %1034 = vst [vmem:[%s1028 + $0x10] sm:$0xff] %v1033
                %v1035 = vld [vmem:[%s1027 + $0x18] sm:$0xff]
                %1036 = vst [vmem:[%s1028 + $0x18] sm:$0xff] %v1035
                %v1037 = vld [vmem:[%s1027 + $0x20] sm:$0xff]
                %1038 = vst [vmem:[%s1028 + $0x20] sm:$0xff] %v1037
                %v1039 = vld [vmem:[%s1027 + $0x28] sm:$0xff]
                %1040 = vst [vmem:[%s1028 + $0x28] sm:$0xff] %v1039
                %v1041 = vld [vmem:[%s1027 + $0x30] sm:$0xff]
                %1042 = vst [vmem:[%s1028 + $0x30] sm:$0xff] %v1041
                %v1043 = vld [vmem:[%s1027 + $0x38] sm:$0xff]
                %1044 = vst [vmem:[%s1028 + $0x38] sm:$0xff] %v1043
                %v1045 = vld [vmem:[%s1027 + $0x40] sm:$0xff]
                %1046 = vst [vmem:[%s1028 + $0x40] sm:$0xff] %v1045
                %v1047 = vld [vmem:[%s1027 + $0x48] sm:$0xff]
                %1048 = vst [vmem:[%s1028 + $0x48] sm:$0xff] %v1047
                %v1049 = vld [vmem:[%s1027 + $0x50] sm:$0xff]
                %1050 = vst [vmem:[%s1028 + $0x50] sm:$0xff] %v1049
                %v1051 = vld [vmem:[%s1027 + $0x58] sm:$0xff]
                %1052 = vst [vmem:[%s1028 + $0x58] sm:$0xff] %v1051
                %v1053 = vld [vmem:[%s1027 + $0x60] sm:$0xff]
                %1054 = vst [vmem:[%s1028 + $0x60] sm:$0xff] %v1053
                %s1055 = sadd.s32 1, %s1026
                %p1056 = scmp.ge.s32.totalorder %s1055, %s1018
                %s1057 = scalar_select %p1056, 0, %s1055
                %s1058 = smul.u32 %s1057, 104
                %s1059 = smul.u32 %s1057, 104
                %s1060 = scalar_lea.vmem %s998, %s1058 [#allocation6]
                %s1061 = scalar_lea.vmem %s1009, %s1059
              $region77: #{dqn_forward.1} parent=71 // loop_footer
                %s1023 = sadd.s32 %s1021, 1
              $region78: #{dqn_forward.1} parent=71 // loop_footer_branch
                %1020 = sbr.rel target = $region74
              $region79: #{dqn_forward.1} parent=71 // loop_exit
                _
              %s1062 = sdiv.u32.pop %s1005, 13
              %s1063 = srem.u32.pop %s1005, 13
              %s1064 = smul.u32 %s1062, 13
              %s1065 = smul.u32 8, %s1064
              %s1066 = scalar_lea.vmem %s998, %s1065 [#allocation6]
              %s1067 = smul.u32 8, %s1064
              %s1068 = scalar_lea.vmem %s1009, %s1067
              // While loop
              $region80: #{dqn_forward.1} parent=71 // loop_pre_header
                _
              $region81: #{dqn_forward.1} parent=71 // loop_header
                %s1070 = sphi 0, %s1072
                %p1071 = scmp.ge.s32.totalorder %s1070, %s1063
                %s1075 = sphi 0, %s1082
                %s1076 = sphi %s1066, %s1085
                %s1077 = sphi %s1068, %s1086
              $region82: #{dqn_forward.1} parent=71 // loop_header_branch
                %1074 = sbr.rel (%p1071) target = $region86
              $region83: #{dqn_forward.1} parent=71 // loop_body
                %v1078 = vld [vmem:[%s1076] sm:$0xff]
                %1079 = vst [vmem:[%s1077] sm:$0xff] %v1078
                %s1080 = sadd.s32 1, %s1075
                %p1081 = scmp.ge.s32.totalorder %s1080, %s1063
                %s1082 = scalar_select %p1081, 0, %s1080
                %s1083 = smul.u32 %s1082, 8
                %s1084 = smul.u32 %s1082, 8
                %s1085 = scalar_lea.vmem %s1066, %s1083 [#allocation6]
                %s1086 = scalar_lea.vmem %s1068, %s1084
              $region84: #{dqn_forward.1} parent=71 // loop_footer
                %s1072 = sadd.s32 %s1070, 1
              $region85: #{dqn_forward.1} parent=71 // loop_footer_branch
                %1069 = sbr.rel target = $region81
              $region86: #{dqn_forward.1} parent=71 // loop_exit
                _
            $region72: #{dqn_forward.1} parent=63 // pred_fallthru
              _
          $region64: #{dqn_forward.1} parent=59 // pred_fallthru
            _
          %1160 = vnop
        $region60: #{dqn_forward.1} parent=47 // pred_fallthru
          _
      $region48: #{dqn_forward.1} parent=5 // pred_fallthru
        _
      %p1161 = scmp.le.s32.totalorder 2, %s15
      // Predicated region
      $region109: #{dqn_forward.1} parent=5 // pred_check
        %p1162 = pneg %p1161
      $region110: #{dqn_forward.1} parent=5 // pred_check_branch
        %1164 = sbr.rel (%p1162) target = $region112
      $region111: #{dqn_forward.1} parent=5 // pred_region
        %s1165 = ssub.s32 %s15, 2
        // Predicated region
        $region113: #{dqn_forward.1} parent=111 // pred_check
          %p1166 = pneg %p196
        $region114: #{dqn_forward.1} parent=111 // pred_check_branch
          %1168 = sbr.rel (%p1166) target = $region116
        $region115: #{dqn_forward.1} parent=111 // pred_region
          %s1169 = sand.u32 %s181, 1
          %s1170 = sand.u32 %s181, 1
          %s1171 = smul.addr %s1170, 104
          %s1172 = scalar_lea.vmem [#allocation6], %s1171
        $region116: #{dqn_forward.1} parent=111 // pred_fallthru
          _
      $region112: #{dqn_forward.1} parent=5 // pred_fallthru
        _
    $region6: #{dqn_forward.1} parent=1 // loop_footer
      %s19 = sadd.s32 1, %s15
    $region7: #{dqn_forward.1} parent=1 // loop_footer_branch
      %14 = sbr.rel target = $region3
    $region8: #{dqn_forward.1} parent=1 // loop_exit
      _
    %1173 = vsyncpa [#allocation3], 1
    %s1174 = scalar_lea.sflag [#allocation3], 1
    %1175 = vsyncpa %s1174, 1
    %1176 = vsyncpa [#allocation5], 1

</llo_original>
